<compile_context>
chip_gen: v5e
topology: v5e:2x2
jax: 0.10.0
libtpu: 0.0.40
codegen_flags: <defaults>
</compile_context>

<pallas_src>
import math

import numpy as np
import jax
import jax.numpy as jnp
from jax.experimental import pallas as pl
from jax.experimental.pallas import tpu as pltpu


# ---------------------------------------------------------------------------
# Filtermap -> conv-weight extraction (host-side parameter setup glue; mirrors
# Conv2d_filtermap.reset_parameters1 / extract_filters, binary_filtermap=False)
# ---------------------------------------------------------------------------
def _filtermap_geometry(in_channels, out_channels):
    # 3x3-conv geometry from _ConvNd_filtermap.__init__ (is_cifar=False branch)
    table = {16: (2, 2, 4), 32: (4, 4, 2), 64: (4, 4, 4),
             128: (8, 4, 4), 256: (8, 8, 4), 512: (8, 8, 8)}
    sample_y, sample_x, sample_c = table[out_channels]
    stride_y = stride_x = 2
    stride_c = in_channels // sample_c
    fm_height = sample_y * stride_y
    fm_width = sample_x * stride_x
    fm_channel = sample_c * stride_c
    return dict(sample_y=sample_y, sample_x=sample_x, sample_c=sample_c,
                stride_y=stride_y, stride_x=stride_x, stride_c=stride_c,
                fm_shape=(fm_channel, fm_height, fm_width))


def _build_ids(in_channels, geom, k_h=3, k_w=3):
    fm_c, fm_h, fm_w = geom["fm_shape"]
    fm_pad_h, fm_pad_w = fm_h + 1, fm_w + 1   # row/col wrap padding (fm_h, fm_w > 1)
    ids = np.array([y * fm_pad_w + x for y in range(k_h) for x in range(k_w)],
                   dtype=np.int64)
    ids0 = ids
    for c in range(1, in_channels):
        ids = np.concatenate([ids, ids0 + c * fm_pad_h * fm_pad_w])
    ids0 = ids
    for y in range(geom["sample_y"]):
        for x in range(geom["sample_x"]):
            if y == 0 and x == 0:
                continue
            ss = y * geom["stride_y"] * fm_pad_w + x * geom["stride_x"]
            ids = np.concatenate([ids, ids0 + ss])
    ids0 = ids
    for c in range(1, geom["sample_c"]):
        ids = np.concatenate(
            [ids, ids0 + c * geom["stride_c"] * fm_pad_h * fm_pad_w])
    return jnp.asarray(ids)


def extract_filters(filtermap, ids, out_channels, in_channels, k_h=3, k_w=3):
    """Reproduces Conv2d_filtermap.extract_filters (binary_filtermap=False)."""
    fm_pad = jnp.concatenate([filtermap, filtermap], axis=0)          # depth x2
    fm_pad = jnp.concatenate([fm_pad, fm_pad[:, 1:2, :]], axis=1)      # +row 1
    fm_pad = jnp.concatenate([fm_pad, fm_pad[:, :, 1:2]], axis=2)      # +col 1
    return fm_pad.reshape(-1)[ids].reshape(out_channels, in_channels, k_h, k_w)


# ---------------------------------------------------------------------------
# BatchNorm folding (inference mode) + kernel-ready parameter packing
# ---------------------------------------------------------------------------
def fold_bn_into_conv(w_oihw, gamma, beta, running_mean, running_var, eps=1e-5):
    """Returns (scale-folded OIHW f32 weight, bias vector)."""
    scale = gamma / jnp.sqrt(running_var + eps)
    bias = beta - running_mean * scale
    return w_oihw * scale.reshape(-1, 1, 1, 1), bias


def make_kernel_params(w1f_oihw, b1, w2f_oihw, b2, width):
    """Pack scale-folded 3x3 weights into per-row block-Toeplitz matrices.

    For each vertical tap dy (0..2) a (W*Cin, W*Cout) matrix T is built so that
        out_row = sum_dy  shifted_input_row(dy) @ T[dy]
    where rows are lane-dense (x, channel) vectors of length W*C.  The x-edge
    zero padding is baked into T (no in-kernel lane shifts / masks needed).
    """
    W = width

    def toeplitz(w_oihw):
        w = np.asarray(w_oihw, np.float32)            # (Cout, Cin, 3, 3)
        cout, cin, kh, kw = w.shape
        T = np.zeros((kh, W * cin, W * cout), np.float32)
        for dy in range(kh):
            for xo in range(W):
                for dx in range(kw):
                    xi = xo + dx - 1                  # input x feeding output xo
                    if 0 <= xi < W:
                        T[dy,
                          xi * cin:(xi + 1) * cin,
                          xo * cout:(xo + 1) * cout] = w[:, :, dy, dx].T
        return jnp.asarray(T, jnp.bfloat16)

    def bias_row(b):
        b = np.asarray(b, np.float32)
        return jnp.asarray(np.tile(b, W).reshape(1, -1), jnp.float32)

    return dict(t1=toeplitz(w1f_oihw), b1=bias_row(b1),
                t2=toeplitz(w2f_oihw), b2=bias_row(b2))


# ---------------------------------------------------------------------------
# Fused Pallas kernel: relu(bn2(conv2(relu(bn1(conv1(x))))) + x)
# ---------------------------------------------------------------------------
def _make_kernel(H):
    def kernel(x_ref, t1_ref, b1_ref, t2_ref, b2_ref, out_ref, ext_ref):
        R, L = x_ref.shape                       # R = Nb*H rows, L = W*C lanes
        HALO = (ext_ref.shape[0] - R) // 2       # 8-row aligned zero halos

        # Zero only the halo rows (one full vreg each side); the centre is
        # fully overwritten by each conv.  Done every step so "parallel"
        # grid semantics stay valid (no cross-iteration state).
        ext_ref[0:HALO, :] = jnp.zeros((HALO, L), jnp.float32)
        ext_ref[HALO + R:HALO + R + HALO, :] = jnp.zeros((HALO, L), jnp.float32)

        # Row-validity masks for the +-1 vertical shifts, computed ONCE and
        # reused by both convs.  They zero rows whose vertical neighbour
        # belongs to a different image of the batched block (the outer image
        # edges are already covered by the zero halo).
        ry = jax.lax.broadcasted_iota(jnp.int32, (R, L), 0) % H
        m_up = ry != 0            # row above is inside the same image
        m_dn = ry != (H - 1)      # row below is inside the same image

        def conv3x3(act, t_ref):
            # act: (R, L) f32, rows = (image, y), lanes = (x, channel).
            ext_ref[HALO:HALO + R, :] = act
            acc = jnp.dot(act.astype(jnp.bfloat16), t_ref[1],
                          preferred_element_type=jnp.float32)
            up = jnp.where(m_up, ext_ref[HALO - 1:HALO - 1 + R, :], 0.0)
            acc = acc + jnp.dot(up.astype(jnp.bfloat16), t_ref[0],
                                preferred_element_type=jnp.float32)
            dn = jnp.where(m_dn, ext_ref[HALO + 1:HALO + 1 + R, :], 0.0)
            acc = acc + jnp.dot(dn.astype(jnp.bfloat16), t_ref[2],
                                preferred_element_type=jnp.float32)
            return acc

        x2d = x_ref[...]                                     # residual (f32)
        # conv1 + folded-bn1 bias + relu   (scale already folded into t1)
        h1 = jnp.maximum(conv3x3(x2d, t1_ref) + b1_ref[...], 0.0)
        # conv2 + folded-bn2 bias + identity shortcut + relu
        h2 = conv3x3(h1, t2_ref) + b2_ref[...] + x2d
        out_ref[...] = jnp.maximum(h2, 0.0).astype(out_ref.dtype)

    return kernel


def _choose_block_images(N, H, target_rows=128):
    """Images per grid step: divisor of N, prefer >=2 grid steps (v7x has two
    TensorCores) and Nb*H <= target_rows (MXU fill vs. vreg pressure)."""
    divs = [d for d in range(1, N + 1) if N % d == 0]
    cands = [d for d in divs if N // d >= 2] or divs
    fit = [d for d in cands if d * H <= target_rows]
    return max(fit) if fit else min(cands)


def basic_block_filtermap_nhwc(x_nhwc, params):
    """Fused BasicBlock_filtermap forward, NHWC in / NHWC out (hot-path API)."""
    N, H, W, C = x_nhwc.shape
    L = W * C
    t1, b1, t2, b2 = params["t1"], params["b1"], params["t2"], params["b2"]
    if t1.shape != (3, L, L) or t2.shape != (3, L, L):
        # TODO(synk): non-identity (1x1 filtermap conv + BN) shortcut / stride!=1
        # not implemented.
        raise NotImplementedError("only the identity-shortcut BasicBlock path is supported")

    Nb = _choose_block_images(N, H)
    R = Nb * H
    HALO = 8

    # Free (row-major) reshape to a lane-dense (N*H, W*C) slab.
    x2d = x_nhwc.reshape(N * H, L)

    out2d = pl.pallas_call(
        _make_kernel(H),
        out_shape=jax.ShapeDtypeStruct((N * H, L), x_nhwc.dtype),
        grid=(N // Nb,),
        in_specs=[
            pl.BlockSpec((R, L), lambda n: (n, 0)),
            pl.BlockSpec(t1.shape, lambda n: (0, 0, 0)),
            pl.BlockSpec(b1.shape, lambda n: (0, 0)),
            pl.BlockSpec(t2.shape, lambda n: (0, 0, 0)),
            pl.BlockSpec(b2.shape, lambda n: (0, 0)),
        ],
        out_specs=pl.BlockSpec((R, L), lambda n: (n, 0)),
        scratch_shapes=[pltpu.VMEM((HALO + R + HALO, L), jnp.float32)],
        compiler_params=pltpu.CompilerParams(
            dimension_semantics=("parallel",)),
    )(x2d, t1, b1, t2, b2)
    return out2d.reshape(N, H, W, C)


def basic_block_filtermap(x_nchw, params):
    """PyTorch-layout (NCHW) convenience wrapper.  For a stack of residual
    blocks, convert the layout once at the network edge and call
    basic_block_filtermap_nhwc directly (the transposes below are per-block
    HBM-touching ops)."""
    x = jnp.transpose(x_nchw, (0, 2, 3, 1))
    out = basic_block_filtermap_nhwc(x, params)
    return jnp.transpose(out, (0, 3, 1, 2))


# ---------------------------------------------------------------------------
# Pure-JAX references (NCHW)
# ---------------------------------------------------------------------------
def _reference(x_nchw, w1f_oihw, b1, w2f_oihw, b2, matmul_dtype):
    """Reference with scale-folded weights.  matmul_dtype=bf16 approximates the
    kernel's numerics (bf16 operands, f32 accumulation); f32 gives the exact
    full-precision forward for a fidelity check."""
    def conv(a, w):
        return jax.lax.conv_general_dilated(
            a.astype(matmul_dtype), w.astype(matmul_dtype),
            window_strides=(1, 1), padding=((1, 1), (1, 1)),
            dimension_numbers=("NCHW", "OIHW", "NCHW"),
            preferred_element_type=jnp.float32,
            precision=jax.lax.Precision.HIGHEST)
    h1 = jnp.maximum(conv(x_nchw, w1f_oihw) + b1.reshape(1, -1, 1, 1), 0.0)
    h2 = conv(h1, w2f_oihw) + b2.reshape(1, -1, 1, 1) + x_nchw
    return jnp.maximum(h2, 0.0)


if __name__ == "__main__":
    # BasicBlock_filtermap(in_planes=16, planes=16, channel_compression_1x1=2,
    #                      binary_filtermap=False, stride=1)
    N, Cin, H, W = 8, 16, 8, 8
    planes = 16

    key = jax.random.PRNGKey(0)
    (k_fm1, k_fm2, k_g1, k_b1, k_g2, k_b2,
     k_m1, k_v1, k_x) = jax.random.split(key, 9)

    geom1 = _filtermap_geometry(Cin, planes)
    geom2 = _filtermap_geometry(planes, planes)
    ids1 = _build_ids(Cin, geom1)
    ids2 = _build_ids(planes, geom2)

    stdv1 = 1.0 / math.sqrt(Cin * 3 * 3)
    stdv2 = 1.0 / math.sqrt(planes * 3 * 3)
    fm1 = jax.random.uniform(k_fm1, geom1["fm_shape"], jnp.float32, -stdv1, stdv1)
    fm2 = jax.random.uniform(k_fm2, geom2["fm_shape"], jnp.float32, -stdv2, stdv2)

    w1_oihw = extract_filters(fm1, ids1, planes, Cin)            # (16,16,3,3)
    w2_oihw = extract_filters(fm2, ids2, planes, planes)         # (16,16,3,3)

    gamma1 = jax.random.uniform(k_g1, (planes,), jnp.float32, 0.5, 1.5)
    beta1 = jax.random.uniform(k_b1, (planes,), jnp.float32, -0.1, 0.1)
    gamma2 = jax.random.uniform(k_g2, (planes,), jnp.float32, 0.5, 1.5)
    beta2 = jax.random.uniform(k_b2, (planes,), jnp.float32, -0.1, 0.1)
    rmean = 0.1 * jax.random.normal(k_m1, (planes,), jnp.float32)
    rvar = jax.random.uniform(k_v1, (planes,), jnp.float32, 0.5, 1.5)

    w1f_oihw, b1 = fold_bn_into_conv(w1_oihw, gamma1, beta1, rmean, rvar)
    w2f_oihw, b2 = fold_bn_into_conv(w2_oihw, gamma2, beta2, rmean, rvar)
    params = make_kernel_params(w1f_oihw, b1, w2f_oihw, b2, W)

    x = jax.random.normal(k_x, (N, Cin, H, W), jnp.float32)      # NCHW input

    out = jax.jit(basic_block_filtermap)(x, params)
    out = jax.block_until_ready(out)
    out_np = np.asarray(out)

    # Check against a reference with roughly matched numerics (bf16 operands,
    # f32 accumulation) -- catches layout / Toeplitz / fusion bugs.
    ref_matched = _reference(x, w1f_oihw, b1, w2f_oihw, b2, jnp.bfloat16)
    np.testing.assert_allclose(out_np, np.asarray(ref_matched),
                               rtol=1e-2, atol=1e-2)

    # Looser fidelity check against the exact f32 forward (bounds the error
    # introduced by using bf16 matmul operands on the MXU).
    ref_f32 = _reference(x, w1f_oihw, b1, w2f_oihw, b2, jnp.float32)
    np.testing.assert_allclose(out_np, np.asarray(ref_f32),
                               rtol=3e-2, atol=3e-2)

    print("KERNEL_OK")
</pallas_src>

<mosaic_0001>
module attributes {stable_mosaic.version = 11 : i64} {
  func.func @kernel(%arg0: i32, %arg1: memref<32x128xf32, #tpu.memory_space<vmem>>, %arg2: memref<3x128x128xbf16, #tpu.memory_space<vmem>>, %arg3: memref<1x128xf32, #tpu.memory_space<vmem>>, %arg4: memref<3x128x128xbf16, #tpu.memory_space<vmem>>, %arg5: memref<1x128xf32, #tpu.memory_space<vmem>>, %arg6: memref<32x128xf32, #tpu.memory_space<vmem>>, %arg7: memref<48x128xf32, #tpu.memory_space<vmem>>) attributes {dimension_semantics = [#tpu.dimension_semantics<parallel>], iteration_bounds = array<i64: 2>, scalar_prefetch = 0 : i64, scratch_operands = 1 : i64, tpu.core_type = #tpu.core_type<tc>, window_params = [{transform_indices = @transform_0, window_bounds = array<i64: 32, 128>}, {pipeline_mode = #tpu.pipeline_mode<synchronous>, transform_indices = @transform_1, window_bounds = array<i64: 3, 128, 128>}, {pipeline_mode = #tpu.pipeline_mode<synchronous>, transform_indices = @transform_2, window_bounds = array<i64: 1, 128>}, {pipeline_mode = #tpu.pipeline_mode<synchronous>, transform_indices = @transform_3, window_bounds = array<i64: 3, 128, 128>}, {pipeline_mode = #tpu.pipeline_mode<synchronous>, transform_indices = @transform_4, window_bounds = array<i64: 1, 128>}, {transform_indices = @transform_5, window_bounds = array<i64: 32, 128>}]} {
    %cst = arith.constant 0.000000e+00 : f32
    %0 = vector.broadcast %cst : f32 to vector<8x128xf32>
    %c0 = arith.constant 0 : index
    %c0_0 = arith.constant 0 : index
    %1 = vector.load %arg7[%c0, %c0_0] : memref<48x128xf32, #tpu.memory_space<vmem>>, vector<8x128xf32>
    tpu.vector_store %arg7[%c0, %c0_0], %0 {strides = array<i32>} : memref<48x128xf32, #tpu.memory_space<vmem>>, vector<8x128xf32>,
    %cst_1 = arith.constant 0.000000e+00 : f32
    %2 = vector.broadcast %cst_1 : f32 to vector<8x128xf32>
    %c40 = arith.constant 40 : index
    %c0_2 = arith.constant 0 : index
    %3 = vector.load %arg7[%c40, %c0_2] : memref<48x128xf32, #tpu.memory_space<vmem>>, vector<8x128xf32>
    tpu.vector_store %arg7[%c40, %c0_2], %2 {strides = array<i32>} : memref<48x128xf32, #tpu.memory_space<vmem>>, vector<8x128xf32>,
    %4 = tpu.iota {dimensions = array<i32: 0>} : vector<32x128xi32>
    %c8_i32 = arith.constant 8 : i32
    %c0_i32 = arith.constant 0 : i32
    %5 = arith.cmpi eq, %c8_i32, %c0_i32 : i32
    %c1_i32 = arith.constant 1 : i32
    %6 = arith.select %5, %c1_i32, %c8_i32 : i32
    %7 = vector.broadcast %6 : i32 to vector<32x128xi32>
    %8 = arith.remsi %4, %7 : vector<32x128xi32>
    %c0_i32_3 = arith.constant 0 : i32
    %9 = vector.broadcast %c0_i32_3 : i32 to vector<32x128xi32>
    %10 = arith.cmpi ne, %8, %9 : vector<32x128xi32>
    %c0_i32_4 = arith.constant 0 : i32
    %11 = vector.broadcast %c0_i32_4 : i32 to vector<32x128xi32>
    %12 = arith.cmpi slt, %8, %11 : vector<32x128xi32>
    %c0_i32_5 = arith.constant 0 : i32
    %13 = arith.cmpi slt, %6, %c0_i32_5 : i32
    %14 = vector.broadcast %13 : i1 to vector<32x128xi1>
    %15 = vector.broadcast %14 : vector<32x128xi1> to vector<32x128xi1>
    %16 = arith.xori %12, %15 : vector<32x128xi1>
    %17 = arith.andi %16, %10 : vector<32x128xi1>
    %18 = vector.broadcast %6 : i32 to vector<32x128xi32>
    %19 = arith.addi %8, %18 : vector<32x128xi32>
    %20 = arith.select %17, %19, %8 : vector<32x128xi1>, vector<32x128xi32>
    %c0_i32_6 = arith.constant 0 : i32
    %21 = vector.broadcast %c0_i32_6 : i32 to vector<32x128xi32>
    %22 = arith.cmpi ne, %20, %21 : vector<32x128xi32>
    %c7_i32 = arith.constant 7 : i32
    %23 = vector.broadcast %c7_i32 : i32 to vector<32x128xi32>
    %24 = arith.cmpi ne, %20, %23 : vector<32x128xi32>
    %c0_7 = arith.constant 0 : index
    %c0_8 = arith.constant 0 : index
    %25 = vector.load %arg1[%c0_7, %c0_8] : memref<32x128xf32, #tpu.memory_space<vmem>>, vector<32x128xf32>
    %c8 = arith.constant 8 : index
    %c0_9 = arith.constant 0 : index
    %26 = vector.load %arg7[%c8, %c0_9] : memref<48x128xf32, #tpu.memory_space<vmem>>, vector<32x128xf32>
    tpu.vector_store %arg7[%c8, %c0_9], %25 {strides = array<i32>} : memref<48x128xf32, #tpu.memory_space<vmem>>, vector<32x128xf32>,
    %27 = arith.truncf %25 : vector<32x128xf32> to vector<32x128xbf16>
    %c1 = arith.constant 1 : index
    %c0_10 = arith.constant 0 : index
    %c0_11 = arith.constant 0 : index
    %28 = vector.load %arg2[%c1, %c0_10, %c0_11] : memref<3x128x128xbf16, #tpu.memory_space<vmem>>, vector<1x128x128xbf16>
    %29 = vector.shape_cast %28 : vector<1x128x128xbf16> to vector<128x128xbf16>
    %cst_12 = arith.constant dense<0.000000e+00> : vector<32x128xf32>
    %30 = tpu.matmul %27, %29, %cst_12 {dimension_numbers = #tpu.dot_dimension_numbers<[1], [0], [0], [1], [0, 0, 1, 1], [], []>} : vector<32x128xbf16>, vector<128x128xbf16>, vector<32x128xf32> -> vector<32x128xf32>
    %c7 = arith.constant 7 : index
    %c0_13 = arith.constant 0 : index
    %31 = vector.load %arg7[%c7, %c0_13] : memref<48x128xf32, #tpu.memory_space<vmem>>, vector<32x128xf32>
    %cst_14 = arith.constant 0.000000e+00 : f32
    %32 = vector.broadcast %cst_14 : f32 to vector<32x128xf32>
    %33 = arith.select %22, %31, %32 : vector<32x128xi1>, vector<32x128xf32>
    %34 = arith.truncf %33 : vector<32x128xf32> to vector<32x128xbf16>
    %c0_15 = arith.constant 0 : index
    %c0_16 = arith.constant 0 : index
    %c0_17 = arith.constant 0 : index
    %35 = vector.load %arg2[%c0_15, %c0_16, %c0_17] : memref<3x128x128xbf16, #tpu.memory_space<vmem>>, vector<1x128x128xbf16>
    %36 = vector.shape_cast %35 : vector<1x128x128xbf16> to vector<128x128xbf16>
    %cst_18 = arith.constant dense<0.000000e+00> : vector<32x128xf32>
    %37 = tpu.matmul %34, %36, %cst_18 {dimension_numbers = #tpu.dot_dimension_numbers<[1], [0], [0], [1], [0, 0, 1, 1], [], []>} : vector<32x128xbf16>, vector<128x128xbf16>, vector<32x128xf32> -> vector<32x128xf32>
    %38 = arith.addf %30, %37 : vector<32x128xf32>
    %c9 = arith.constant 9 : index
    %c0_19 = arith.constant 0 : index
    %39 = vector.load %arg7[%c9, %c0_19] : memref<48x128xf32, #tpu.memory_space<vmem>>, vector<32x128xf32>
    %cst_20 = arith.constant 0.000000e+00 : f32
    %40 = vector.broadcast %cst_20 : f32 to vector<32x128xf32>
    %41 = arith.select %24, %39, %40 : vector<32x128xi1>, vector<32x128xf32>
    %42 = arith.truncf %41 : vector<32x128xf32> to vector<32x128xbf16>
    %c2 = arith.constant 2 : index
    %c0_21 = arith.constant 0 : index
    %c0_22 = arith.constant 0 : index
    %43 = vector.load %arg2[%c2, %c0_21, %c0_22] : memref<3x128x128xbf16, #tpu.memory_space<vmem>>, vector<1x128x128xbf16>
    %44 = vector.shape_cast %43 : vector<1x128x128xbf16> to vector<128x128xbf16>
    %cst_23 = arith.constant dense<0.000000e+00> : vector<32x128xf32>
    %45 = tpu.matmul %42, %44, %cst_23 {dimension_numbers = #tpu.dot_dimension_numbers<[1], [0], [0], [1], [0, 0, 1, 1], [], []>} : vector<32x128xbf16>, vector<128x128xbf16>, vector<32x128xf32> -> vector<32x128xf32>
    %46 = arith.addf %38, %45 : vector<32x128xf32>
    %c0_24 = arith.constant 0 : index
    %c0_25 = arith.constant 0 : index
    %47 = vector.load %arg3[%c0_24, %c0_25] : memref<1x128xf32, #tpu.memory_space<vmem>>, vector<1x128xf32>
    %48 = vector.broadcast %47 : vector<1x128xf32> to vector<32x128xf32>
    %49 = arith.addf %46, %48 : vector<32x128xf32>
    %cst_26 = arith.constant 0.000000e+00 : f32
    %50 = vector.broadcast %cst_26 : f32 to vector<32x128xf32>
    %51 = arith.maximumf %49, %50 : vector<32x128xf32>
    %c8_27 = arith.constant 8 : index
    %c0_28 = arith.constant 0 : index
    %52 = vector.load %arg7[%c8_27, %c0_28] : memref<48x128xf32, #tpu.memory_space<vmem>>, vector<32x128xf32>
    tpu.vector_store %arg7[%c8_27, %c0_28], %51 {strides = array<i32>} : memref<48x128xf32, #tpu.memory_space<vmem>>, vector<32x128xf32>,
    %53 = arith.truncf %51 : vector<32x128xf32> to vector<32x128xbf16>
    %c1_29 = arith.constant 1 : index
    %c0_30 = arith.constant 0 : index
    %c0_31 = arith.constant 0 : index
    %54 = vector.load %arg4[%c1_29, %c0_30, %c0_31] : memref<3x128x128xbf16, #tpu.memory_space<vmem>>, vector<1x128x128xbf16>
    %55 = vector.shape_cast %54 : vector<1x128x128xbf16> to vector<128x128xbf16>
    %cst_32 = arith.constant dense<0.000000e+00> : vector<32x128xf32>
    %56 = tpu.matmul %53, %55, %cst_32 {dimension_numbers = #tpu.dot_dimension_numbers<[1], [0], [0], [1], [0, 0, 1, 1], [], []>} : vector<32x128xbf16>, vector<128x128xbf16>, vector<32x128xf32> -> vector<32x128xf32>
    %c7_33 = arith.constant 7 : index
    %c0_34 = arith.constant 0 : index
    %57 = vector.load %arg7[%c7_33, %c0_34] : memref<48x128xf32, #tpu.memory_space<vmem>>, vector<32x128xf32>
    %cst_35 = arith.constant 0.000000e+00 : f32
    %58 = vector.broadcast %cst_35 : f32 to vector<32x128xf32>
    %59 = arith.select %22, %57, %58 : vector<32x128xi1>, vector<32x128xf32>
    %60 = arith.truncf %59 : vector<32x128xf32> to vector<32x128xbf16>
    %c0_36 = arith.constant 0 : index
    %c0_37 = arith.constant 0 : index
    %c0_38 = arith.constant 0 : index
    %61 = vector.load %arg4[%c0_36, %c0_37, %c0_38] : memref<3x128x128xbf16, #tpu.memory_space<vmem>>, vector<1x128x128xbf16>
    %62 = vector.shape_cast %61 : vector<1x128x128xbf16> to vector<128x128xbf16>
    %cst_39 = arith.constant dense<0.000000e+00> : vector<32x128xf32>
    %63 = tpu.matmul %60, %62, %cst_39 {dimension_numbers = #tpu.dot_dimension_numbers<[1], [0], [0], [1], [0, 0, 1, 1], [], []>} : vector<32x128xbf16>, vector<128x128xbf16>, vector<32x128xf32> -> vector<32x128xf32>
    %64 = arith.addf %56, %63 : vector<32x128xf32>
    %c9_40 = arith.constant 9 : index
    %c0_41 = arith.constant 0 : index
    %65 = vector.load %arg7[%c9_40, %c0_41] : memref<48x128xf32, #tpu.memory_space<vmem>>, vector<32x128xf32>
    %cst_42 = arith.constant 0.000000e+00 : f32
    %66 = vector.broadcast %cst_42 : f32 to vector<32x128xf32>
    %67 = arith.select %24, %65, %66 : vector<32x128xi1>, vector<32x128xf32>
    %68 = arith.truncf %67 : vector<32x128xf32> to vector<32x128xbf16>
    %c2_43 = arith.constant 2 : index
    %c0_44 = arith.constant 0 : index
    %c0_45 = arith.constant 0 : index
    %69 = vector.load %arg4[%c2_43, %c0_44, %c0_45] : memref<3x128x128xbf16, #tpu.memory_space<vmem>>, vector<1x128x128xbf16>
    %70 = vector.shape_cast %69 : vector<1x128x128xbf16> to vector<128x128xbf16>
    %cst_46 = arith.constant dense<0.000000e+00> : vector<32x128xf32>
    %71 = tpu.matmul %68, %70, %cst_46 {dimension_numbers = #tpu.dot_dimension_numbers<[1], [0], [0], [1], [0, 0, 1, 1], [], []>} : vector<32x128xbf16>, vector<128x128xbf16>, vector<32x128xf32> -> vector<32x128xf32>
    %72 = arith.addf %64, %71 : vector<32x128xf32>
    %c0_47 = arith.constant 0 : index
    %c0_48 = arith.constant 0 : index
    %73 = vector.load %arg5[%c0_47, %c0_48] : memref<1x128xf32, #tpu.memory_space<vmem>>, vector<1x128xf32>
    %74 = vector.broadcast %73 : vector<1x128xf32> to vector<32x128xf32>
    %75 = arith.addf %72, %74 : vector<32x128xf32>
    %76 = arith.addf %75, %25 : vector<32x128xf32>
    %cst_49 = arith.constant 0.000000e+00 : f32
    %77 = vector.broadcast %cst_49 : f32 to vector<32x128xf32>
    %78 = arith.maximumf %76, %77 : vector<32x128xf32>
    %c0_50 = arith.constant 0 : index
    %c0_51 = arith.constant 0 : index
    %79 = vector.load %arg6[%c0_50, %c0_51] : memref<32x128xf32, #tpu.memory_space<vmem>>, vector<32x128xf32>
    tpu.vector_store %arg6[%c0_50, %c0_51], %78 {strides = array<i32>} : memref<32x128xf32, #tpu.memory_space<vmem>>, vector<32x128xf32>,
    return
  }
  func.func @transform_0(%arg0: i32) -> (i32, i32) {
    %c0_i32 = arith.constant 0 : i32
    %c0_i32_0 = arith.constant 0 : i32
    return %arg0, %c0_i32 : i32, i32
  }
  func.func @transform_1(%arg0: i32) -> (i32, i32, i32) {
    %c0_i32 = arith.constant 0 : i32
    %c0_i32_0 = arith.constant 0 : i32
    %c0_i32_1 = arith.constant 0 : i32
    %c0_i32_2 = arith.constant 0 : i32
    return %c0_i32, %c0_i32_0, %c0_i32_1 : i32, i32, i32
  }
  func.func @transform_2(%arg0: i32) -> (i32, i32) {
    %c0_i32 = arith.constant 0 : i32
    %c0_i32_0 = arith.constant 0 : i32
    %c0_i32_1 = arith.constant 0 : i32
    return %c0_i32, %c0_i32_0 : i32, i32
  }
  func.func @transform_3(%arg0: i32) -> (i32, i32, i32) {
    %c0_i32 = arith.constant 0 : i32
    %c0_i32_0 = arith.constant 0 : i32
    %c0_i32_1 = arith.constant 0 : i32
    %c0_i32_2 = arith.constant 0 : i32
    return %c0_i32, %c0_i32_0, %c0_i32_1 : i32, i32, i32
  }
  func.func @transform_4(%arg0: i32) -> (i32, i32) {
    %c0_i32 = arith.constant 0 : i32
    %c0_i32_0 = arith.constant 0 : i32
    %c0_i32_1 = arith.constant 0 : i32
    return %c0_i32, %c0_i32_0 : i32, i32
  }
  func.func @transform_5(%arg0: i32) -> (i32, i32) {
    %c0_i32 = arith.constant 0 : i32
    %c0_i32_0 = arith.constant 0 : i32
    return %arg0, %c0_i32 : i32, i32
  }
}

</mosaic_0001>

<llo_original>
// kernel: basic_block_filtermap.1
$region0: #{basic_block_filtermap.1}
  #allocation0 [shape = 'u32[]', space=smem, size = 0x4, offset = 0x4, fixed_abs, tag = 'smem constant byte address 0x4 - core index']
  #allocation1 [shape = 'u32[72,128]{1,0:T(1,128)}', space=vmem, size = 0x9000, scoped, tag = 'internal scratch']
  #allocation2 [shape = 'f32[48,128]{1,0:T(8,128)}', space=vmem, size = 0x6000, scoped, tag = 'scratch operand']
  %s0 = inlined_call_operand.vmem [shape: f32[64,128], index: 0, kind: input, shape index: {}]
  %s1 = inlined_call_operand.vmem [shape: bf16[3,128,128], index: 1, kind: input, shape index: {}]
  %s2 = inlined_call_operand.vmem [shape: f32[1,128], index: 2, kind: input, shape index: {}]
  %s3 = inlined_call_operand.vmem [shape: bf16[3,128,128], index: 3, kind: input, shape index: {}]
  %s4 = inlined_call_operand.vmem [shape: f32[1,128], index: 4, kind: input, shape index: {}]
  %s5 = inlined_call_operand.vmem [shape: f32[64,128], index: 5, kind: output, shape index: {}]
  %s6 = sld [smem:[#allocation0]]
  $region53: #{basic_block_filtermap.1} parent=0
    _
  %s8 = ssub.s32 1, %s6
  %s9 = scalar_select 0, %s8, %s6
  loop: start=0, step=1, limit=4
  $region2: #{basic_block_filtermap.1} parent=0 // loop_pre_header
    _
  $region3: #{basic_block_filtermap.1} parent=0 // loop_header
    %s11 = sphi 0, %s15
    %p12 = scmp.ge.s32.totalorder %s11, 4
    %s21 = sphi 0, %s23
    %s24 = sphi 0, %s21
    %s25 = sphi 0, %s24
    %s41 = sphi 0, %s25
    %s45 = sphi 0, %s45
    %s47 = sphi 0, %s45
    %s48 = sphi 0, %s47
    %s62 = sphi 0, %s48
    %s66 = sphi 0, %s66
    %s68 = sphi 0, %s66
    %s69 = sphi 0, %s68
    %s83 = sphi 0, %s69
    %s87 = sphi 0, %s87
    %s89 = sphi 0, %s87
    %s90 = sphi 0, %s89
    %s104 = sphi 0, %s90
    %s108 = sphi 0, %s108
    %s110 = sphi 0, %s108
    %s111 = sphi 0, %s110
    %s125 = sphi 0, %s111
    %s131 = sphi 0, %s133
    %s134 = sphi 0, %s131
    %s135 = sphi 0, %s134
    %s151 = sphi 0, %s135
  $region4: #{basic_block_filtermap.1} parent=0 // loop_header_branch
    %14 = sbr.rel (%p12) target = $region8
  $region5: #{basic_block_filtermap.1} parent=0 // loop_body
    %s16 = ssub.s32 %s11, 1
    %s17 = ssub.s32 %s11, 2
    %s18 = sadd.s32 %s11, 1
    %s19 = ssub.s32 %s11, %s18
    %p20 = scmp.eq.s32.totalorder %s19, 0
    %s22 = sadd.s32 %s21, 1
    %s23 = scalar_select %p20, %s21, %s22
    %p26 = pneg %p20
    %p27 = scmp.eq.s32.totalorder %s11, 1
    %p28 = por %p26, %p27
    %p29 = scmp.ne.s32.totalorder %s21, %s24
    %p30 = scmp.eq.s32.totalorder %s11, 0
    %p31 = por %p29, %p30
    %p32 = scmp.ne.s32.totalorder %s21, %s24
    %p33 = scmp.eq.s32.totalorder %s16, 1
    %p34 = por %p32, %p33
    %p35 = scmp.ne.s32.totalorder %s24, %s25
    %p36 = scmp.eq.s32.totalorder %s16, 0
    %p37 = por %p35, %p36
    %p38 = scmp.ne.s32.totalorder %s24, %s25
    %p39 = scmp.eq.s32.totalorder %s17, 1
    %p40 = por %p38, %p39
    %p42 = scmp.ne.s32.totalorder %s25, %s41
    %p43 = scmp.eq.s32.totalorder %s17, 0
    %p44 = por %p42, %p43
    %s46 = sadd.s32 %s45, 1
    %p49 = scmp.eq.s32.totalorder %s11, 1
    %p50 = scmp.ne.s32.totalorder %s45, %s47
    %p51 = scmp.eq.s32.totalorder %s11, 0
    %p52 = por %p50, %p51
    %p53 = scmp.ne.s32.totalorder %s45, %s47
    %p54 = scmp.eq.s32.totalorder %s16, 1
    %p55 = por %p53, %p54
    %p56 = scmp.ne.s32.totalorder %s47, %s48
    %p57 = scmp.eq.s32.totalorder %s16, 0
    %p58 = por %p56, %p57
    %p59 = scmp.ne.s32.totalorder %s47, %s48
    %p60 = scmp.eq.s32.totalorder %s17, 1
    %p61 = por %p59, %p60
    %p63 = scmp.ne.s32.totalorder %s48, %s62
    %p64 = scmp.eq.s32.totalorder %s17, 0
    %p65 = por %p63, %p64
    %s67 = sadd.s32 %s66, 1
    %p70 = scmp.eq.s32.totalorder %s11, 1
    %p71 = scmp.ne.s32.totalorder %s66, %s68
    %p72 = scmp.eq.s32.totalorder %s11, 0
    %p73 = por %p71, %p72
    %p74 = scmp.ne.s32.totalorder %s66, %s68
    %p75 = scmp.eq.s32.totalorder %s16, 1
    %p76 = por %p74, %p75
    %p77 = scmp.ne.s32.totalorder %s68, %s69
    %p78 = scmp.eq.s32.totalorder %s16, 0
    %p79 = por %p77, %p78
    %p80 = scmp.ne.s32.totalorder %s68, %s69
    %p81 = scmp.eq.s32.totalorder %s17, 1
    %p82 = por %p80, %p81
    %p84 = scmp.ne.s32.totalorder %s69, %s83
    %p85 = scmp.eq.s32.totalorder %s17, 0
    %p86 = por %p84, %p85
    %s88 = sadd.s32 %s87, 1
    %p91 = scmp.eq.s32.totalorder %s11, 1
    %p92 = scmp.ne.s32.totalorder %s87, %s89
    %p93 = scmp.eq.s32.totalorder %s11, 0
    %p94 = por %p92, %p93
    %p95 = scmp.ne.s32.totalorder %s87, %s89
    %p96 = scmp.eq.s32.totalorder %s16, 1
    %p97 = por %p95, %p96
    %p98 = scmp.ne.s32.totalorder %s89, %s90
    %p99 = scmp.eq.s32.totalorder %s16, 0
    %p100 = por %p98, %p99
    %p101 = scmp.ne.s32.totalorder %s89, %s90
    %p102 = scmp.eq.s32.totalorder %s17, 1
    %p103 = por %p101, %p102
    %p105 = scmp.ne.s32.totalorder %s90, %s104
    %p106 = scmp.eq.s32.totalorder %s17, 0
    %p107 = por %p105, %p106
    %s109 = sadd.s32 %s108, 1
    %p112 = scmp.eq.s32.totalorder %s11, 1
    %p113 = scmp.ne.s32.totalorder %s108, %s110
    %p114 = scmp.eq.s32.totalorder %s11, 0
    %p115 = por %p113, %p114
    %p116 = scmp.ne.s32.totalorder %s108, %s110
    %p117 = scmp.eq.s32.totalorder %s16, 1
    %p118 = por %p116, %p117
    %p119 = scmp.ne.s32.totalorder %s110, %s111
    %p120 = scmp.eq.s32.totalorder %s16, 0
    %p121 = por %p119, %p120
    %p122 = scmp.ne.s32.totalorder %s110, %s111
    %p123 = scmp.eq.s32.totalorder %s17, 1
    %p124 = por %p122, %p123
    %p126 = scmp.ne.s32.totalorder %s111, %s125
    %p127 = scmp.eq.s32.totalorder %s17, 0
    %p128 = por %p126, %p127
    %s129 = ssub.s32 %s11, %s18
    %p130 = scmp.eq.s32.totalorder %s129, 0
    %s132 = sadd.s32 %s131, 1
    %s133 = scalar_select %p130, %s131, %s132
    %p136 = pneg %p130
    %p137 = scmp.eq.s32.totalorder %s11, 1
    %p138 = por %p136, %p137
    %p139 = scmp.ne.s32.totalorder %s131, %s134
    %p140 = scmp.eq.s32.totalorder %s11, 0
    %p141 = por %p139, %p140
    %p142 = scmp.ne.s32.totalorder %s131, %s134
    %p143 = scmp.eq.s32.totalorder %s16, 1
    %p144 = por %p142, %p143
    %p145 = scmp.ne.s32.totalorder %s134, %s135
    %p146 = scmp.eq.s32.totalorder %s16, 0
    %p147 = por %p145, %p146
    %p148 = scmp.ne.s32.totalorder %s134, %s135
    %p149 = scmp.eq.s32.totalorder %s17, 1
    %p150 = por %p148, %p149
    %p152 = scmp.ne.s32.totalorder %s135, %s151
    %p153 = scmp.eq.s32.totalorder %s17, 0
    %p154 = por %p152, %p153
    %p155 = scmp.le.s32.totalorder 1, %s11
    %p156 = scmp.lt.s32.totalorder %s11, 3
    %p157 = pnand %p155, %p156
    %p158 = pneg %p157
    // Predicated region
    $region9: #{basic_block_filtermap.1} parent=5 // pred_check
      _
    $region10: #{basic_block_filtermap.1} parent=5 // pred_check_branch
      %160 = sbr.rel (%p157) target = $region12
    $region11: #{basic_block_filtermap.1} parent=5 // pred_region
      %s161 = ssub.s32 %s11, 1
      // Predicated region
      $region13: #{basic_block_filtermap.1} parent=11 // pred_check
        %p162 = pneg %p58
      $region14: #{basic_block_filtermap.1} parent=11 // pred_check_branch
        %164 = sbr.rel (%p162) target = $region16
      $region15: #{basic_block_filtermap.1} parent=11 // pred_region
        _
      $region16: #{basic_block_filtermap.1} parent=11 // pred_fallthru
        _
      // Predicated region
      $region17: #{basic_block_filtermap.1} parent=11 // pred_check
        %p165 = pneg %p79
      $region18: #{basic_block_filtermap.1} parent=11 // pred_check_branch
        %167 = sbr.rel (%p165) target = $region20
      $region19: #{basic_block_filtermap.1} parent=11 // pred_region
        _
      $region20: #{basic_block_filtermap.1} parent=11 // pred_fallthru
        _
      // Predicated region
      $region21: #{basic_block_filtermap.1} parent=11 // pred_check
        %p168 = pneg %p100
      $region22: #{basic_block_filtermap.1} parent=11 // pred_check_branch
        %170 = sbr.rel (%p168) target = $region24
      $region23: #{basic_block_filtermap.1} parent=11 // pred_region
        _
      $region24: #{basic_block_filtermap.1} parent=11 // pred_fallthru
        _
      // Predicated region
      $region25: #{basic_block_filtermap.1} parent=11 // pred_check
        %p171 = pneg %p121
      $region26: #{basic_block_filtermap.1} parent=11 // pred_check_branch
        %173 = sbr.rel (%p171) target = $region28
      $region27: #{basic_block_filtermap.1} parent=11 // pred_region
        _
      $region28: #{basic_block_filtermap.1} parent=11 // pred_fallthru
        _
    $region12: #{basic_block_filtermap.1} parent=5 // pred_fallthru
      _
    %p174 = scmp.lt.s32.totalorder %s11, 2
    // Predicated region
    $region29: #{basic_block_filtermap.1} parent=5 // pred_check
      %p175 = pneg %p174
    $region30: #{basic_block_filtermap.1} parent=5 // pred_check_branch
      %177 = sbr.rel (%p175) target = $region32
    $region31: #{basic_block_filtermap.1} parent=5 // pred_region
      // Predicated region
      $region33: #{basic_block_filtermap.1} parent=31 // pred_check
        %p178 = pneg %p31
      $region34: #{basic_block_filtermap.1} parent=31 // pred_check_branch
        %180 = sbr.rel (%p178) target = $region36
      $region35: #{basic_block_filtermap.1} parent=31 // pred_region
        %s181 = smul.u32 4, %s11
        %p182 = scmp.lt.s32.totalorder %s181, 7
        %s183 = scalar_select %p182, %s181, 7
        %s184 = smul.addr %s183, 8
        %s185 = scalar_lea.vmem %s0, %s184
        %s186 = smul.u32 4, %s11
      $region36: #{basic_block_filtermap.1} parent=31 // pred_fallthru
        _
    $region32: #{basic_block_filtermap.1} parent=5 // pred_fallthru
      _
    %p187 = scmp.le.s32.totalorder 1, %s11
    %p188 = scmp.lt.s32.totalorder %s11, 3
    %p189 = pnand %p187, %p188
    %p190 = pneg %p189
    // Predicated region
    $region37: #{basic_block_filtermap.1} parent=5 // pred_check
      _
    $region38: #{basic_block_filtermap.1} parent=5 // pred_check_branch
      %192 = sbr.rel (%p189) target = $region40
    $region39: #{basic_block_filtermap.1} parent=5 // pred_region
      %s193 = ssub.s32 %s11, 1
      %s194 = smul.u32 4, %s16
      %p195 = scmp.lt.s32.totalorder %s194, 7
      %s196 = scalar_select %p195, %s194, 7
      %s197 = smul.addr %s196, 8
      %s198 = scalar_lea.vmem %s0, %s197
      %p199 = pneg %p37
      %p200 = pneg %p34
      %p201 = pneg %p58
      %p202 = pneg %p55
      %p203 = pneg %p79
      %p204 = pneg %p76
      %p205 = pneg %p100
      %p206 = pneg %p97
      %p207 = pneg %p121
      %p208 = pneg %p118
      %p209 = pneg %p147
      %p210 = pneg %p144
      %s211 = smul.u32 4, %s16
      %p212 = scmp.lt.s32.totalorder %s211, 7
      %s213 = scalar_select %p212, %s211, 7
      %s214 = smul.addr %s213, 8
      %s215 = scalar_lea.vmem %s5, %s214
      %s216 = smul.u32 4, %s16
      %p217 = scmp.lt.s32.totalorder %s216, 7
      %s218 = scalar_select %p217, %s216, 7
      %s219 = smul.addr %s218, 8
      %s220 = scalar_lea.vmem %s0, %s219
      %s221 = smul.u32 4, %s16
      %s222 = smul.u32 4, %s16
      %p223 = scmp.lt.s32.totalorder %s222, 7
      %s224 = scalar_select %p223, %s222, 7
      %s225 = smul.addr %s224, 8
      %s226 = scalar_lea.vmem %s5, %s225
      %s227 = smul.u32 4, %s16
      %228 = vst [vmem:[#allocation2] sm:$0xff] 0.0
      %229 = vst [vmem:[#allocation2 + $0x28] sm:$0xff] 0.0
      %v230 = vlaneseq
      %v231 = vshrl.u32 %v230, 7
      %v232 = vadd.s32 %v231, 8
      %v233 = vadd.s32 %v231, 16
      %v234 = vadd.s32 %v231, 24
      %vm235 = vcmp.lt.s32.totalorder %v231, 0
      %v236 = vsub.s32 0, %v231
      %v237 = vsel %vm235, %v236, %v231
      %v238 = vshrl.u32 %v237, 3
      %v239 = vand.u32 %v237, 7
      %v240 = vsub.s32 0, %v239
      %v241 = vsel %vm235, %v240, %v239
      %vm242 = vcmp.lt.s32.totalorder %v232, 0
      %v243 = vsub.s32 0, %v232
      %v244 = vsel %vm242, %v243, %v232
      %v245 = vshrl.u32 %v244, 3
      %v246 = vand.u32 %v244, 7
      %v247 = vsub.s32 0, %v246
      %v248 = vsel %vm242, %v247, %v246
      %vm249 = vcmp.lt.s32.totalorder %v233, 0
      %v250 = vsub.s32 0, %v233
      %v251 = vsel %vm249, %v250, %v233
      %v252 = vshrl.u32 %v251, 3
      %v253 = vand.u32 %v251, 7
      %v254 = vsub.s32 0, %v253
      %v255 = vsel %vm249, %v254, %v253
      %vm256 = vcmp.lt.s32.totalorder %v234, 0
      %v257 = vsub.s32 0, %v234
      %v258 = vsel %vm256, %v257, %v234
      %v259 = vshrl.u32 %v258, 3
      %v260 = vand.u32 %v258, 7
      %v261 = vsub.s32 0, %v260
      %v262 = vsel %vm256, %v261, %v260
      %vm263 = vcmp.ne.s32.totalorder %v241, 0
      %vm264 = vcmp.ne.s32.totalorder %v248, 0
      %vm265 = vcmp.ne.s32.totalorder %v255, 0
      %vm266 = vcmp.ne.s32.totalorder %v262, 0
      %vm267 = vcmp.lt.s32.totalorder %v241, 0
      %vm268 = vcmp.lt.s32.totalorder %v248, 0
      %vm269 = vcmp.lt.s32.totalorder %v255, 0
      %vm270 = vcmp.lt.s32.totalorder %v262, 0
      %vm271 = vmand %vm267, %vm263
      %vm272 = vmand %vm268, %vm264
      %vm273 = vmand %vm269, %vm265
      %vm274 = vmand %vm270, %vm266
      %v275 = vadd.s32 %v241, 8
      %v276 = vadd.s32 %v248, 8
      %v277 = vadd.s32 %v255, 8
      %v278 = vadd.s32 %v262, 8
      %v279 = vsel %vm271, %v275, %v241
      %v280 = vsel %vm272, %v276, %v248
      %v281 = vsel %vm273, %v277, %v255
      %v282 = vsel %vm274, %v278, %v262
      %vm283 = vcmp.ne.s32.totalorder %v279, 0
      %vm284 = vcmp.ne.s32.totalorder %v280, 0
      %vm285 = vcmp.ne.s32.totalorder %v281, 0
      %vm286 = vcmp.ne.s32.totalorder %v282, 0
      %vm287 = vcmp.ne.s32.totalorder %v279, 7
      %vm288 = vcmp.ne.s32.totalorder %v280, 7
      %vm289 = vcmp.ne.s32.totalorder %v281, 7
      %vm290 = vcmp.ne.s32.totalorder %v282, 7
      %v291 = vld [vmem:[%s220] sm:$0xff]
      %v292 = vld [vmem:[%s220 + $0x8] sm:$0xff]
      %v293 = vld [vmem:[%s220 + $0x10] sm:$0xff]
      %v294 = vld [vmem:[%s220 + $0x18] sm:$0xff]
      %295 = vst [vmem:[#allocation2 + $0x8] sm:$0xff] %v291
      %296 = vst [vmem:[#allocation2 + $0x10] sm:$0xff] %v292
      %297 = vst [vmem:[#allocation2 + $0x18] sm:$0xff] %v293
      %298 = vst [vmem:[#allocation2 + $0x20] sm:$0xff] %v294
      %v299 = vpack.c.bf16 %v292, %v291
      %v300 = vpack.c.bf16 %v294, %v293
      %s301 = scalar_lea.vmem %s1, 64
      %v302 = vld [vmem:[%s301] sm:$0xf]
      %v303 = vld [vmem:[%s301 + $0x4] sm:$0xf]
      %v304 = vld [vmem:[%s301 + $0x8] sm:$0xf]
      %v305 = vld [vmem:[%s301 + $0xc] sm:$0xf]
      %v306 = vld [vmem:[%s301 + $0x10] sm:$0xf]
      %v307 = vld [vmem:[%s301 + $0x14] sm:$0xf]
      %v308 = vld [vmem:[%s301 + $0x18] sm:$0xf]
      %v309 = vld [vmem:[%s301 + $0x1c] sm:$0xf]
      %v310 = vld [vmem:[%s301 + $0x20] sm:$0xf]
      %v311 = vld [vmem:[%s301 + $0x24] sm:$0xf]
      %v312 = vld [vmem:[%s301 + $0x28] sm:$0xf]
      %v313 = vld [vmem:[%s301 + $0x2c] sm:$0xf]
      %v314 = vld [vmem:[%s301 + $0x30] sm:$0xf]
      %v315 = vld [vmem:[%s301 + $0x34] sm:$0xf]
      %v316 = vld [vmem:[%s301 + $0x38] sm:$0xf]
      %v317 = vld [vmem:[%s301 + $0x3c] sm:$0xf]
      %v318 = vld [vmem:[#allocation2 + $0x7] sm:$0xff]
      %v319 = vld [vmem:[#allocation2 + $0xf] sm:$0xff]
      %v320 = vld [vmem:[#allocation2 + $0x17] sm:$0xff]
      %v321 = vld [vmem:[#allocation2 + $0x1f] sm:$0xff]
      %v322 = vsel %vm283, %v318, 0.0
      %v323 = vsel %vm284, %v319, 0.0
      %v324 = vsel %vm285, %v320, 0.0
      %v325 = vsel %vm286, %v321, 0.0
      %v326 = vpack.c.bf16 %v323, %v322
      %v327 = vpack.c.bf16 %v325, %v324
      %v328 = vld [vmem:[%s1] sm:$0xf]
      %v329 = vld [vmem:[%s1 + $0x4] sm:$0xf]
      %v330 = vld [vmem:[%s1 + $0x8] sm:$0xf]
      %v331 = vld [vmem:[%s1 + $0xc] sm:$0xf]
      %v332 = vld [vmem:[%s1 + $0x10] sm:$0xf]
      %v333 = vld [vmem:[%s1 + $0x14] sm:$0xf]
      %v334 = vld [vmem:[%s1 + $0x18] sm:$0xf]
      %v335 = vld [vmem:[%s1 + $0x1c] sm:$0xf]
      %v336 = vld [vmem:[%s1 + $0x20] sm:$0xf]
      %v337 = vld [vmem:[%s1 + $0x24] sm:$0xf]
      %v338 = vld [vmem:[%s1 + $0x28] sm:$0xf]
      %v339 = vld [vmem:[%s1 + $0x2c] sm:$0xf]
      %v340 = vld [vmem:[%s1 + $0x30] sm:$0xf]
      %v341 = vld [vmem:[%s1 + $0x34] sm:$0xf]
      %v342 = vld [vmem:[%s1 + $0x38] sm:$0xf]
      %v343 = vld [vmem:[%s1 + $0x3c] sm:$0xf]
      %v360 = vunpack.c.l.b16 %v328
      %v361 = vunpack.c.l.b16 %v329
      %v362 = vunpack.c.l.b16 %v330
      %v363 = vunpack.c.l.b16 %v331
      %v364 = vunpack.c.l.b16 %v332
      %v365 = vunpack.c.l.b16 %v333
      %v366 = vunpack.c.l.b16 %v334
      %v367 = vunpack.c.l.b16 %v335
      %v368 = vunpack.c.l.b16 %v336
      %v369 = vunpack.c.l.b16 %v337
      %v370 = vunpack.c.l.b16 %v338
      %v371 = vunpack.c.l.b16 %v339
      %v372 = vunpack.c.l.b16 %v340
      %v373 = vunpack.c.l.b16 %v341
      %v374 = vunpack.c.l.b16 %v342
      %v375 = vunpack.c.l.b16 %v343
      %v376 = vpack.c.b16 %v361, %v360
      %v377 = vpack.c.b16 %v363, %v362
      %v378 = vpack.c.b16 %v365, %v364
      %v379 = vpack.c.b16 %v367, %v366
      %v380 = vpack.c.b16 %v369, %v368
      %v381 = vpack.c.b16 %v371, %v370
      %v382 = vpack.c.b16 %v373, %v372
      %v383 = vpack.c.b16 %v375, %v374
      %392 = vmatpush.bf16.msra.mxu0 %v383
      %393 = vmatpush.bf16.msra.mxu0 %v382
      %394 = vmatpush.bf16.msra.mxu0 %v381
      %395 = vmatpush.bf16.msra.mxu0 %v380
      %396 = vmatpush.bf16.msra.mxu0 %v379
      %397 = vmatpush.bf16.msra.mxu0 %v378
      %398 = vmatpush.bf16.msra.mxu0 %v377
      %399 = vmatpush.bf16.msra.mxu0 %v376
      %400 = vmatmul.bf16.gmra.mxu0 %v326
      %v401 = vpop.f32.mrf.mxu0
      %v402 = vadd.f32 0.0, %v401
      %v403 = vpop.f32.mrf.mxu0
      %v404 = vadd.f32 0.0, %v403
      %405 = vmatmul.bf16.gmra.mxu0 %v327
      %v406 = vpop.f32.mrf.mxu0
      %v407 = vadd.f32 0.0, %v406
      %v408 = vpop.f32.mrf.mxu0
      %v409 = vadd.f32 0.0, %v408
      %410 = vdwg.mxu0
      %v427 = vunpack.c.l.b16 %v302
      %v428 = vunpack.c.l.b16 %v303
      %v429 = vunpack.c.l.b16 %v304
      %v430 = vunpack.c.l.b16 %v305
      %v431 = vunpack.c.l.b16 %v306
      %v432 = vunpack.c.l.b16 %v307
      %v433 = vunpack.c.l.b16 %v308
      %v434 = vunpack.c.l.b16 %v309
      %v435 = vunpack.c.l.b16 %v310
      %v436 = vunpack.c.l.b16 %v311
      %v437 = vunpack.c.l.b16 %v312
      %v438 = vunpack.c.l.b16 %v313
      %v439 = vunpack.c.l.b16 %v314
      %v440 = vunpack.c.l.b16 %v315
      %v441 = vunpack.c.l.b16 %v316
      %v442 = vunpack.c.l.b16 %v317
      %v443 = vpack.c.b16 %v428, %v427
      %v444 = vpack.c.b16 %v430, %v429
      %v445 = vpack.c.b16 %v432, %v431
      %v446 = vpack.c.b16 %v434, %v433
      %v447 = vpack.c.b16 %v436, %v435
      %v448 = vpack.c.b16 %v438, %v437
      %v449 = vpack.c.b16 %v440, %v439
      %v450 = vpack.c.b16 %v442, %v441
      %459 = vmatpush.bf16.msra.mxu0 %v450
      %460 = vmatpush.bf16.msra.mxu0 %v449
      %461 = vmatpush.bf16.msra.mxu0 %v448
      %462 = vmatpush.bf16.msra.mxu0 %v447
      %463 = vmatpush.bf16.msra.mxu0 %v446
      %464 = vmatpush.bf16.msra.mxu0 %v445
      %465 = vmatpush.bf16.msra.mxu0 %v444
      %466 = vmatpush.bf16.msra.mxu0 %v443
      %467 = vmatmul.bf16.gmra.mxu0 %v299
      %v468 = vpop.f32.mrf.mxu0
      %v469 = vadd.f32 %v402, %v468
      %v470 = vpop.f32.mrf.mxu0
      %v471 = vadd.f32 %v404, %v470
      %472 = vmatmul.bf16.gmra.mxu0 %v300
      %v473 = vpop.f32.mrf.mxu0
      %v474 = vadd.f32 %v407, %v473
      %v475 = vpop.f32.mrf.mxu0
      %v476 = vadd.f32 %v409, %v475
      %477 = vdwg.mxu0
      %v478 = vld [vmem:[#allocation2 + $0x9] sm:$0xff]
      %v479 = vld [vmem:[#allocation2 + $0x11] sm:$0xff]
      %v480 = vld [vmem:[#allocation2 + $0x19] sm:$0xff]
      %v481 = vld [vmem:[#allocation2 + $0x21] sm:$0xff]
      %v482 = vsel %vm287, %v478, 0.0
      %v483 = vsel %vm288, %v479, 0.0
      %v484 = vsel %vm289, %v480, 0.0
      %v485 = vsel %vm290, %v481, 0.0
      %v486 = vpack.c.bf16 %v483, %v482
      %v487 = vpack.c.bf16 %v485, %v484
      %s488 = scalar_lea.vmem %s1, 128
      %v489 = vld [vmem:[%s488] sm:$0xf]
      %v490 = vld [vmem:[%s488 + $0x4] sm:$0xf]
      %v491 = vld [vmem:[%s488 + $0x8] sm:$0xf]
      %v492 = vld [vmem:[%s488 + $0xc] sm:$0xf]
      %v493 = vld [vmem:[%s488 + $0x10] sm:$0xf]
      %v494 = vld [vmem:[%s488 + $0x14] sm:$0xf]
      %v495 = vld [vmem:[%s488 + $0x18] sm:$0xf]
      %v496 = vld [vmem:[%s488 + $0x1c] sm:$0xf]
      %v497 = vld [vmem:[%s488 + $0x20] sm:$0xf]
      %v498 = vld [vmem:[%s488 + $0x24] sm:$0xf]
      %v499 = vld [vmem:[%s488 + $0x28] sm:$0xf]
      %v500 = vld [vmem:[%s488 + $0x2c] sm:$0xf]
      %v501 = vld [vmem:[%s488 + $0x30] sm:$0xf]
      %v502 = vld [vmem:[%s488 + $0x34] sm:$0xf]
      %v503 = vld [vmem:[%s488 + $0x38] sm:$0xf]
      %v504 = vld [vmem:[%s488 + $0x3c] sm:$0xf]
      %v521 = vunpack.c.l.b16 %v489
      %v522 = vunpack.c.l.b16 %v490
      %v523 = vunpack.c.l.b16 %v491
      %v524 = vunpack.c.l.b16 %v492
      %v525 = vunpack.c.l.b16 %v493
      %v526 = vunpack.c.l.b16 %v494
      %v527 = vunpack.c.l.b16 %v495
      %v528 = vunpack.c.l.b16 %v496
      %v529 = vunpack.c.l.b16 %v497
      %v530 = vunpack.c.l.b16 %v498
      %v531 = vunpack.c.l.b16 %v499
      %v532 = vunpack.c.l.b16 %v500
      %v533 = vunpack.c.l.b16 %v501
      %v534 = vunpack.c.l.b16 %v502
      %v535 = vunpack.c.l.b16 %v503
      %v536 = vunpack.c.l.b16 %v504
      %v537 = vpack.c.b16 %v522, %v521
      %v538 = vpack.c.b16 %v524, %v523
      %v539 = vpack.c.b16 %v526, %v525
      %v540 = vpack.c.b16 %v528, %v527
      %v541 = vpack.c.b16 %v530, %v529
      %v542 = vpack.c.b16 %v532, %v531
      %v543 = vpack.c.b16 %v534, %v533
      %v544 = vpack.c.b16 %v536, %v535
      %553 = vmatpush.bf16.msra.mxu0 %v544
      %554 = vmatpush.bf16.msra.mxu0 %v543
      %555 = vmatpush.bf16.msra.mxu0 %v542
      %556 = vmatpush.bf16.msra.mxu0 %v541
      %557 = vmatpush.bf16.msra.mxu0 %v540
      %558 = vmatpush.bf16.msra.mxu0 %v539
      %559 = vmatpush.bf16.msra.mxu0 %v538
      %560 = vmatpush.bf16.msra.mxu0 %v537
      %561 = vmatmul.bf16.gmra.mxu0 %v486
      %v562 = vpop.f32.mrf.mxu0
      %v563 = vadd.f32 0.0, %v562
      %v564 = vpop.f32.mrf.mxu0
      %v565 = vadd.f32 0.0, %v564
      %566 = vmatmul.bf16.gmra.mxu0 %v487
      %v567 = vpop.f32.mrf.mxu0
      %v568 = vadd.f32 0.0, %v567
      %v569 = vpop.f32.mrf.mxu0
      %v570 = vadd.f32 0.0, %v569
      %571 = vdwg.mxu0
      %v572 = vadd.f32 %v469, %v563
      %v573 = vadd.f32 %v471, %v565
      %v574 = vadd.f32 %v474, %v568
      %v575 = vadd.f32 %v476, %v570
      %v576 = vld [vmem:[%s2] sm:$0x1]
      %v578 = vperm.slane %v576, 0
      %v580 = vadd.f32 %v572, %v578
      %v581 = vadd.f32 %v573, %v578
      %v582 = vadd.f32 %v574, %v578
      %v583 = vadd.f32 %v575, %v578
      %v584 = vmax.f32 %v580, 0.0
      %v585 = vmax.f32 %v581, 0.0
      %v586 = vmax.f32 %v582, 0.0
      %v587 = vmax.f32 %v583, 0.0
      %588 = vst [vmem:[#allocation2 + $0x8] sm:$0xff] %v584
      %589 = vst [vmem:[#allocation2 + $0x10] sm:$0xff] %v585
      %590 = vst [vmem:[#allocation2 + $0x18] sm:$0xff] %v586
      %591 = vst [vmem:[#allocation2 + $0x20] sm:$0xff] %v587
      %v592 = vpack.c.bf16 %v585, %v584
      %v593 = vpack.c.bf16 %v587, %v586
      %s594 = scalar_lea.vmem %s3, 64
      %v595 = vld [vmem:[%s594] sm:$0xf]
      %v596 = vld [vmem:[%s594 + $0x4] sm:$0xf]
      %v597 = vld [vmem:[%s594 + $0x8] sm:$0xf]
      %v598 = vld [vmem:[%s594 + $0xc] sm:$0xf]
      %v599 = vld [vmem:[%s594 + $0x10] sm:$0xf]
      %v600 = vld [vmem:[%s594 + $0x14] sm:$0xf]
      %v601 = vld [vmem:[%s594 + $0x18] sm:$0xf]
      %v602 = vld [vmem:[%s594 + $0x1c] sm:$0xf]
      %v603 = vld [vmem:[%s594 + $0x20] sm:$0xf]
      %v604 = vld [vmem:[%s594 + $0x24] sm:$0xf]
      %v605 = vld [vmem:[%s594 + $0x28] sm:$0xf]
      %v606 = vld [vmem:[%s594 + $0x2c] sm:$0xf]
      %v607 = vld [vmem:[%s594 + $0x30] sm:$0xf]
      %v608 = vld [vmem:[%s594 + $0x34] sm:$0xf]
      %v609 = vld [vmem:[%s594 + $0x38] sm:$0xf]
      %v610 = vld [vmem:[%s594 + $0x3c] sm:$0xf]
      %v611 = vld [vmem:[#allocation2 + $0x7] sm:$0xff]
      %v612 = vld [vmem:[#allocation2 + $0xf] sm:$0xff]
      %v613 = vld [vmem:[#allocation2 + $0x17] sm:$0xff]
      %v614 = vld [vmem:[#allocation2 + $0x1f] sm:$0xff]
      %v615 = vsel %vm283, %v611, 0.0
      %v616 = vsel %vm284, %v612, 0.0
      %v617 = vsel %vm285, %v613, 0.0
      %v618 = vsel %vm286, %v614, 0.0
      %v619 = vpack.c.bf16 %v616, %v615
      %v620 = vpack.c.bf16 %v618, %v617
      %v621 = vld [vmem:[%s3] sm:$0xf]
      %v622 = vld [vmem:[%s3 + $0x4] sm:$0xf]
      %v623 = vld [vmem:[%s3 + $0x8] sm:$0xf]
      %v624 = vld [vmem:[%s3 + $0xc] sm:$0xf]
      %v625 = vld [vmem:[%s3 + $0x10] sm:$0xf]
      %v626 = vld [vmem:[%s3 + $0x14] sm:$0xf]
      %v627 = vld [vmem:[%s3 + $0x18] sm:$0xf]
      %v628 = vld [vmem:[%s3 + $0x1c] sm:$0xf]
      %v629 = vld [vmem:[%s3 + $0x20] sm:$0xf]
      %v630 = vld [vmem:[%s3 + $0x24] sm:$0xf]
      %v631 = vld [vmem:[%s3 + $0x28] sm:$0xf]
      %v632 = vld [vmem:[%s3 + $0x2c] sm:$0xf]
      %v633 = vld [vmem:[%s3 + $0x30] sm:$0xf]
      %v634 = vld [vmem:[%s3 + $0x34] sm:$0xf]
      %v635 = vld [vmem:[%s3 + $0x38] sm:$0xf]
      %v636 = vld [vmem:[%s3 + $0x3c] sm:$0xf]
      %v653 = vunpack.c.l.b16 %v621
      %v654 = vunpack.c.l.b16 %v622
      %v655 = vunpack.c.l.b16 %v623
      %v656 = vunpack.c.l.b16 %v624
      %v657 = vunpack.c.l.b16 %v625
      %v658 = vunpack.c.l.b16 %v626
      %v659 = vunpack.c.l.b16 %v627
      %v660 = vunpack.c.l.b16 %v628
      %v661 = vunpack.c.l.b16 %v629
      %v662 = vunpack.c.l.b16 %v630
      %v663 = vunpack.c.l.b16 %v631
      %v664 = vunpack.c.l.b16 %v632
      %v665 = vunpack.c.l.b16 %v633
      %v666 = vunpack.c.l.b16 %v634
      %v667 = vunpack.c.l.b16 %v635
      %v668 = vunpack.c.l.b16 %v636
      %v669 = vpack.c.b16 %v654, %v653
      %v670 = vpack.c.b16 %v656, %v655
      %v671 = vpack.c.b16 %v658, %v657
      %v672 = vpack.c.b16 %v660, %v659
      %v673 = vpack.c.b16 %v662, %v661
      %v674 = vpack.c.b16 %v664, %v663
      %v675 = vpack.c.b16 %v666, %v665
      %v676 = vpack.c.b16 %v668, %v667
      %685 = vmatpush.bf16.msra.mxu0 %v676
      %686 = vmatpush.bf16.msra.mxu0 %v675
      %687 = vmatpush.bf16.msra.mxu0 %v674
      %688 = vmatpush.bf16.msra.mxu0 %v673
      %689 = vmatpush.bf16.msra.mxu0 %v672
      %690 = vmatpush.bf16.msra.mxu0 %v671
      %691 = vmatpush.bf16.msra.mxu0 %v670
      %692 = vmatpush.bf16.msra.mxu0 %v669
      %693 = vmatmul.bf16.gmra.mxu0 %v619
      %v694 = vpop.f32.mrf.mxu0
      %v695 = vadd.f32 0.0, %v694
      %v696 = vpop.f32.mrf.mxu0
      %v697 = vadd.f32 0.0, %v696
      %698 = vmatmul.bf16.gmra.mxu0 %v620
      %v699 = vpop.f32.mrf.mxu0
      %v700 = vadd.f32 0.0, %v699
      %v701 = vpop.f32.mrf.mxu0
      %v702 = vadd.f32 0.0, %v701
      %703 = vdwg.mxu0
      %v720 = vunpack.c.l.b16 %v595
      %v721 = vunpack.c.l.b16 %v596
      %v722 = vunpack.c.l.b16 %v597
      %v723 = vunpack.c.l.b16 %v598
      %v724 = vunpack.c.l.b16 %v599
      %v725 = vunpack.c.l.b16 %v600
      %v726 = vunpack.c.l.b16 %v601
      %v727 = vunpack.c.l.b16 %v602
      %v728 = vunpack.c.l.b16 %v603
      %v729 = vunpack.c.l.b16 %v604
      %v730 = vunpack.c.l.b16 %v605
      %v731 = vunpack.c.l.b16 %v606
      %v732 = vunpack.c.l.b16 %v607
      %v733 = vunpack.c.l.b16 %v608
      %v734 = vunpack.c.l.b16 %v609
      %v735 = vunpack.c.l.b16 %v610
      %v736 = vpack.c.b16 %v721, %v720
      %v737 = vpack.c.b16 %v723, %v722
      %v738 = vpack.c.b16 %v725, %v724
      %v739 = vpack.c.b16 %v727, %v726
      %v740 = vpack.c.b16 %v729, %v728
      %v741 = vpack.c.b16 %v731, %v730
      %v742 = vpack.c.b16 %v733, %v732
      %v743 = vpack.c.b16 %v735, %v734
      %752 = vmatpush.bf16.msra.mxu0 %v743
      %753 = vmatpush.bf16.msra.mxu0 %v742
      %754 = vmatpush.bf16.msra.mxu0 %v741
      %755 = vmatpush.bf16.msra.mxu0 %v740
      %756 = vmatpush.bf16.msra.mxu0 %v739
      %757 = vmatpush.bf16.msra.mxu0 %v738
      %758 = vmatpush.bf16.msra.mxu0 %v737
      %759 = vmatpush.bf16.msra.mxu0 %v736
      %760 = vmatmul.bf16.gmra.mxu0 %v592
      %v761 = vpop.f32.mrf.mxu0
      %v762 = vadd.f32 %v695, %v761
      %v763 = vpop.f32.mrf.mxu0
      %v764 = vadd.f32 %v697, %v763
      %765 = vmatmul.bf16.gmra.mxu0 %v593
      %v766 = vpop.f32.mrf.mxu0
      %v767 = vadd.f32 %v700, %v766
      %v768 = vpop.f32.mrf.mxu0
      %v769 = vadd.f32 %v702, %v768
      %770 = vdwg.mxu0
      %v771 = vld [vmem:[#allocation2 + $0x9] sm:$0xff]
      %v772 = vld [vmem:[#allocation2 + $0x11] sm:$0xff]
      %v773 = vld [vmem:[#allocation2 + $0x19] sm:$0xff]
      %v774 = vld [vmem:[#allocation2 + $0x21] sm:$0xff]
      %v775 = vsel %vm287, %v771, 0.0
      %v776 = vsel %vm288, %v772, 0.0
      %v777 = vsel %vm289, %v773, 0.0
      %v778 = vsel %vm290, %v774, 0.0
      %v779 = vpack.c.bf16 %v776, %v775
      %v780 = vpack.c.bf16 %v778, %v777
      %s781 = scalar_lea.vmem %s3, 128
      %v782 = vld [vmem:[%s781] sm:$0xf]
      %v783 = vld [vmem:[%s781 + $0x4] sm:$0xf]
      %v784 = vld [vmem:[%s781 + $0x8] sm:$0xf]
      %v785 = vld [vmem:[%s781 + $0xc] sm:$0xf]
      %v786 = vld [vmem:[%s781 + $0x10] sm:$0xf]
      %v787 = vld [vmem:[%s781 + $0x14] sm:$0xf]
      %v788 = vld [vmem:[%s781 + $0x18] sm:$0xf]
      %v789 = vld [vmem:[%s781 + $0x1c] sm:$0xf]
      %v790 = vld [vmem:[%s781 + $0x20] sm:$0xf]
      %v791 = vld [vmem:[%s781 + $0x24] sm:$0xf]
      %v792 = vld [vmem:[%s781 + $0x28] sm:$0xf]
      %v793 = vld [vmem:[%s781 + $0x2c] sm:$0xf]
      %v794 = vld [vmem:[%s781 + $0x30] sm:$0xf]
      %v795 = vld [vmem:[%s781 + $0x34] sm:$0xf]
      %v796 = vld [vmem:[%s781 + $0x38] sm:$0xf]
      %v797 = vld [vmem:[%s781 + $0x3c] sm:$0xf]
      %v814 = vunpack.c.l.b16 %v782
      %v815 = vunpack.c.l.b16 %v783
      %v816 = vunpack.c.l.b16 %v784
      %v817 = vunpack.c.l.b16 %v785
      %v818 = vunpack.c.l.b16 %v786
      %v819 = vunpack.c.l.b16 %v787
      %v820 = vunpack.c.l.b16 %v788
      %v821 = vunpack.c.l.b16 %v789
      %v822 = vunpack.c.l.b16 %v790
      %v823 = vunpack.c.l.b16 %v791
      %v824 = vunpack.c.l.b16 %v792
      %v825 = vunpack.c.l.b16 %v793
      %v826 = vunpack.c.l.b16 %v794
      %v827 = vunpack.c.l.b16 %v795
      %v828 = vunpack.c.l.b16 %v796
      %v829 = vunpack.c.l.b16 %v797
      %v830 = vpack.c.b16 %v815, %v814
      %v831 = vpack.c.b16 %v817, %v816
      %v832 = vpack.c.b16 %v819, %v818
      %v833 = vpack.c.b16 %v821, %v820
      %v834 = vpack.c.b16 %v823, %v822
      %v835 = vpack.c.b16 %v825, %v824
      %v836 = vpack.c.b16 %v827, %v826
      %v837 = vpack.c.b16 %v829, %v828
      %846 = vmatpush.bf16.msra.mxu0 %v837
      %847 = vmatpush.bf16.msra.mxu0 %v836
      %848 = vmatpush.bf16.msra.mxu0 %v835
      %849 = vmatpush.bf16.msra.mxu0 %v834
      %850 = vmatpush.bf16.msra.mxu0 %v833
      %851 = vmatpush.bf16.msra.mxu0 %v832
      %852 = vmatpush.bf16.msra.mxu0 %v831
      %853 = vmatpush.bf16.msra.mxu0 %v830
      %854 = vmatmul.bf16.gmra.mxu0 %v779
      %v855 = vpop.f32.mrf.mxu0
      %v856 = vadd.f32 0.0, %v855
      %v857 = vpop.f32.mrf.mxu0
      %v858 = vadd.f32 0.0, %v857
      %859 = vmatmul.bf16.gmra.mxu0 %v780
      %v860 = vpop.f32.mrf.mxu0
      %v861 = vadd.f32 0.0, %v860
      %v862 = vpop.f32.mrf.mxu0
      %v863 = vadd.f32 0.0, %v862
      %864 = vdwg.mxu0
      %v865 = vadd.f32 %v762, %v856
      %v866 = vadd.f32 %v764, %v858
      %v867 = vadd.f32 %v767, %v861
      %v868 = vadd.f32 %v769, %v863
      %v869 = vld [vmem:[%s4] sm:$0x1]
      %v871 = vperm.slane %v869, 0
      %v873 = vadd.f32 %v865, %v871
      %v874 = vadd.f32 %v866, %v871
      %v875 = vadd.f32 %v867, %v871
      %v876 = vadd.f32 %v868, %v871
      %v877 = vadd.f32 %v873, %v291
      %v878 = vadd.f32 %v874, %v292
      %v879 = vadd.f32 %v875, %v293
      %v880 = vadd.f32 %v876, %v294
      %v881 = vmax.f32 %v877, 0.0
      %v882 = vmax.f32 %v878, 0.0
      %v883 = vmax.f32 %v879, 0.0
      %v884 = vmax.f32 %v880, 0.0
      %885 = vst [vmem:[%s226] sm:$0xff] %v881
      %886 = vst [vmem:[%s226 + $0x8] sm:$0xff] %v882
      %887 = vst [vmem:[%s226 + $0x10] sm:$0xff] %v883
      %888 = vst [vmem:[%s226 + $0x18] sm:$0xff] %v884
      %s889 = smul.u32 4, %s16
      %p890 = scmp.lt.s32.totalorder %s889, 7
      %s891 = scalar_select %p890, %s889, 7
      %s892 = smul.addr %s891, 8
      %s893 = scalar_lea.vmem %s5, %s892
      // Predicated region
      $region41: #{basic_block_filtermap.1} parent=39 // pred_check
        %p894 = pneg %p144
      $region42: #{basic_block_filtermap.1} parent=39 // pred_check_branch
        %896 = sbr.rel (%p894) target = $region44
      $region43: #{basic_block_filtermap.1} parent=39 // pred_region
        %s897 = smul.u32 4, %s16
      $region44: #{basic_block_filtermap.1} parent=39 // pred_fallthru
        _
    $region40: #{basic_block_filtermap.1} parent=5 // pred_fallthru
      _
    %p898 = scmp.le.s32.totalorder 2, %s11
    // Predicated region
    $region45: #{basic_block_filtermap.1} parent=5 // pred_check
      %p899 = pneg %p898
    $region46: #{basic_block_filtermap.1} parent=5 // pred_check_branch
      %901 = sbr.rel (%p899) target = $region48
    $region47: #{basic_block_filtermap.1} parent=5 // pred_region
      %s902 = ssub.s32 %s11, 2
      // Predicated region
      $region49: #{basic_block_filtermap.1} parent=47 // pred_check
        %p903 = pneg %p150
      $region50: #{basic_block_filtermap.1} parent=47 // pred_check_branch
        %905 = sbr.rel (%p903) target = $region52
      $region51: #{basic_block_filtermap.1} parent=47 // pred_region
        %s906 = smul.u32 4, %s17
        %p907 = scmp.lt.s32.totalorder %s906, 7
        %s908 = scalar_select %p907, %s906, 7
        %s909 = smul.addr %s908, 8
        %s910 = scalar_lea.vmem %s5, %s909
      $region52: #{basic_block_filtermap.1} parent=47 // pred_fallthru
        _
    $region48: #{basic_block_filtermap.1} parent=5 // pred_fallthru
      _
  $region6: #{basic_block_filtermap.1} parent=0 // loop_footer
    %s15 = sadd.s32 1, %s11
  $region7: #{basic_block_filtermap.1} parent=0 // loop_footer_branch
    %10 = sbr.rel target = $region3
  $region8: #{basic_block_filtermap.1} parent=0 // loop_exit
    _

</llo_original>
